<compile_context>
chip_gen: v7x
topology: tpu7x:2x2x1
jax: 0.10.0
libtpu: 0.0.40
codegen_flags: <defaults>
</compile_context>

<pallas_src>
import functools

import jax
import jax.numpy as jnp
from jax.experimental import pallas as pl
from jax.experimental.pallas import tpu as pltpu

LANES = 128
SUBLANES = 8
_ALIGN = SUBLANES * LANES  # 1024 elements


def _log_sum_kernel(x_ref, o_ref, *, tile_rows, valid_rows, steps_per_core,
                    need_mask):
    """Accumulate sum(log(x)) into this core's (8, 128) output block."""
    c = pl.program_id(0)  # core axis ("parallel")
    i = pl.program_id(1)  # streaming axis ("arbitrary")

    @pl.when(i == 0)
    def _():
        o_ref[...] = jnp.zeros_like(o_ref)

    tile = x_ref[...].astype(jnp.float32)  # (tile_rows, LANES); cast is filler
    logs = jnp.log(tile)                   # EUP; single negate done in wrapper

    if need_mask:
        # Rows past the end of the slab (ragged last block / clamped padding
        # block on the second core) hold garbage -> discard via select (NOT
        # arithmetic masking, so NaN/-inf never propagate).
        blk = c * steps_per_core + i
        row_ids = jax.lax.broadcasted_iota(jnp.int32, (tile_rows, LANES), 0)
        in_bounds = (blk * tile_rows + row_ids) < valid_rows
        logs = jnp.where(in_bounds, logs, 0.0)

    # (tile_rows, 128) -> (8, 128): pure vreg (VPU) adds, no cross-lane moves.
    o_ref[...] += logs.reshape(tile_rows // SUBLANES, SUBLANES, LANES).sum(axis=0)


def _tpu_generation_config():
    """Return (max_tile_rows, num_cores) for the current TPU generation."""
    try:
        kind = jax.devices()[0].device_kind.lower()
    except Exception:  # pragma: no cover
        kind = ""
    if "v5" in kind:
        return 4096, 1  # 2 MiB f32 block; 16 MiB default scoped VMEM
    if "v7" in kind:
        return 8192, 2  # 4 MiB f32 block; 2 TensorCores per chip
    return 8192, 1      # v6e and default


def generator_loss(dis_fake_preds: jax.Array) -> jax.Array:
    """Pallas TPU implementation of GeneratorLoss.forward: mean(-log(x))."""
    n_true = dis_fake_preds.size
    flat = dis_fake_preds.reshape(-1)

    # Aligned prefix goes through the Pallas kernel; the <1024-element ragged
    # tail is folded in with plain JAX (no full-array pad copy in HBM).
    aligned = (flat.size // _ALIGN) * _ALIGN
    tail_log = None
    if aligned < flat.size:
        tail_log = jnp.sum(jnp.log(flat[aligned:].astype(jnp.float32)))

    if aligned == 0:
        total_log = tail_log
    else:
        rows = aligned // LANES                      # multiple of SUBLANES
        slab = flat[:aligned].reshape(rows, LANES)   # original dtype

        max_tile_rows, num_cores = _tpu_generation_config()
        tile_rows = min(max_tile_rows, rows)
        num_blocks = pl.cdiv(rows, tile_rows)
        if num_blocks < 2:
            num_cores = 1
        steps_per_core = pl.cdiv(num_blocks, num_cores)
        covered_rows = num_cores * steps_per_core * tile_rows
        need_mask = covered_rows != rows
        has_pad_blocks = num_cores * steps_per_core > num_blocks

        if has_pad_blocks:
            # Clamp so padding blocks on the second core stay in bounds; their
            # contribution is zeroed by the in-kernel row mask.
            def in_map(c, i):
                return (jnp.minimum(c * steps_per_core + i, num_blocks - 1), 0)
        else:
            def in_map(c, i):
                return (c * steps_per_core + i, 0)

        kernel = functools.partial(
            _log_sum_kernel,
            tile_rows=tile_rows,
            valid_rows=rows,
            steps_per_core=steps_per_core,
            need_mask=need_mask,
        )

        # VMEM budget: double-buffered input block (original dtype) + f32
        # cast/log/mask temporaries + accumulator + headroom.
        block_bytes = tile_rows * LANES * jnp.dtype(slab.dtype).itemsize
        temp_bytes = 4 * tile_rows * LANES * 4
        vmem_limit = max(2 * block_bytes + temp_bytes + (2 << 20), 16 << 20)

        partial_sums = pl.pallas_call(
            kernel,
            out_shape=jax.ShapeDtypeStruct((num_cores * SUBLANES, LANES),
                                           jnp.float32),
            grid_spec=pltpu.PrefetchScalarGridSpec(
                num_scalar_prefetch=0,
                grid=(num_cores, steps_per_core),
                in_specs=[pl.BlockSpec((tile_rows, LANES), in_map)],
                out_specs=pl.BlockSpec((SUBLANES, LANES), lambda c, i: (c, 0)),
            ),
            compiler_params=pltpu.CompilerParams(
                dimension_semantics=("parallel", "arbitrary"),
                vmem_limit_bytes=int(vmem_limit),
            ),
        )(slab)

        total_log = jnp.sum(partial_sums)  # tiny per-core reduce + negate once
        if tail_log is not None:
            total_log = total_log + tail_log

    loss = -total_log / jnp.float32(n_true)
    return loss.astype(dis_fake_preds.dtype)


if __name__ == "__main__":
    key = jax.random.PRNGKey(0)

    # Discriminator "fake" predictions: probabilities in (0, 1).
    dis_fake_preds = jax.random.uniform(
        key, (2, 4, 16, 16), dtype=jnp.float32, minval=0.05, maxval=0.95
    )
    loss = generator_loss(dis_fake_preds)
    jax.block_until_ready(loss)
    ref = jnp.mean(-jnp.log(dis_fake_preds))
    assert jnp.allclose(loss, ref, rtol=1e-5, atol=1e-6), (loss, ref)

    # Ragged size: exercises the aligned-prefix kernel + plain-JAX tail path.
    k2 = jax.random.PRNGKey(0)
    ragged = jax.random.uniform(
        k2, (2, 4, 17, 16), dtype=jnp.float32, minval=0.05, maxval=0.95
    )
    loss2 = generator_loss(ragged)
    jax.block_until_ready(loss2)
    ref2 = jnp.mean(-jnp.log(ragged))
    assert jnp.allclose(loss2, ref2, rtol=1e-5, atol=1e-6), (loss2, ref2)

    print("KERNEL_OK")
</pallas_src>

<mosaic_0001>
module attributes {stable_mosaic.version = 11 : i64} {
  func.func @_log_sum_kernel(%arg0: i32, %arg1: i32, %arg2: memref<16x128xf32, #tpu.memory_space<vmem>>, %arg3: memref<8x128xf32, #tpu.memory_space<vmem>>) attributes {dimension_semantics = [#tpu.dimension_semantics<parallel>, #tpu.dimension_semantics<arbitrary>], iteration_bounds = array<i64: 1, 1>, scalar_prefetch = 0 : i64, scratch_operands = 0 : i64, tpu.core_type = #tpu.core_type<tc>, window_params = [{transform_indices = @transform_0, window_bounds = array<i64: 16, 128>}, {transform_indices = @transform_1, window_bounds = array<i64: 8, 128>}]} {
    %c0_i32 = arith.constant 0 : i32
    %0 = arith.cmpi eq, %arg1, %c0_i32 : i32
    %1 = arith.extui %0 : i1 to i32
    %c0_i32_0 = arith.constant 0 : i32
    %2 = arith.cmpi ne, %1, %c0_i32_0 : i32
    scf.if %2 {
      %cst_6 = arith.constant 0.000000e+00 : f32
      %10 = vector.broadcast %cst_6 : f32 to vector<8x128xf32>
      %c0_7 = arith.constant 0 : index
      %c0_8 = arith.constant 0 : index
      %11 = vector.load %arg3[%c0_7, %c0_8] : memref<8x128xf32, #tpu.memory_space<vmem>>, vector<8x128xf32>
      tpu.vector_store %arg3[%c0_7, %c0_8], %10 {strides = array<i32>} : memref<8x128xf32, #tpu.memory_space<vmem>>, vector<8x128xf32>,
    } else {
    }
    %c0 = arith.constant 0 : index
    %c0_1 = arith.constant 0 : index
    %3 = vector.load %arg2[%c0, %c0_1] : memref<16x128xf32, #tpu.memory_space<vmem>>, vector<16x128xf32>
    %4 = math.log %3 : vector<16x128xf32>
    %c0_2 = arith.constant 0 : index
    %c0_3 = arith.constant 0 : index
    %5 = vector.load %arg3[%c0_2, %c0_3] : memref<8x128xf32, #tpu.memory_space<vmem>>, vector<8x128xf32>
    %6 = vector.shape_cast %4 : vector<16x128xf32> to vector<2x8x128xf32>
    %cst = arith.constant dense<0.000000e+00> : vector<8x128xf32>
    %7 = vector.multi_reduction <add>, %6, %cst [0] : vector<2x8x128xf32> to vector<8x128xf32>
    %8 = arith.addf %5, %7 : vector<8x128xf32>
    %c0_4 = arith.constant 0 : index
    %c0_5 = arith.constant 0 : index
    %9 = vector.load %arg3[%c0_4, %c0_5] : memref<8x128xf32, #tpu.memory_space<vmem>>, vector<8x128xf32>
    tpu.vector_store %arg3[%c0_4, %c0_5], %8 {strides = array<i32>} : memref<8x128xf32, #tpu.memory_space<vmem>>, vector<8x128xf32>,
    return
  }
  func.func @transform_0(%arg0: i32, %arg1: i32) -> (i32, i32) {
    %c1_i32 = arith.constant 1 : i32
    %0 = arith.muli %arg0, %c1_i32 : i32
    %1 = arith.addi %0, %arg1 : i32
    %c0_i32 = arith.constant 0 : i32
    %c0_i32_0 = arith.constant 0 : i32
    return %1, %c0_i32 : i32, i32
  }
  func.func @transform_1(%arg0: i32, %arg1: i32) -> (i32, i32) {
    %c0_i32 = arith.constant 0 : i32
    %c0_i32_0 = arith.constant 0 : i32
    return %arg0, %c0_i32 : i32, i32
  }
}

</mosaic_0001>

<llo_original>
// kernel: tpu_custom_call.1
$region0: #{tpu_custom_call.1}
  #allocation0 [shape = 'u32[]', space=smem, size = 0x4, offset = 0x4, fixed_abs, tag = 'smem constant byte address 0x4 - core index']
  #allocation1 [shape = 'u32[144,128]{1,0:T(1,128)}', space=vmem, size = 0x12000, scoped, tag = 'internal scratch']
  %s0 = inlined_call_operand.hbm [shape: f32[16,128], index: 0, kind: input, shape index: {}]
  %s1 = inlined_call_operand.hbm [shape: f32[8,128], index: 1, kind: output, shape index: {}]
  %s2 = sld [smem:[#allocation0]]
  $region22: #{tpu_custom_call.1} parent=0
    _
  %s4 = ssub.s32 1, %s2
  %s5 = scalar_select 0, %s4, %s2
  $region1: #{tpu_custom_call.1} parent=0
    #allocation2 [shape = 'u8[8192]{0}', space=vmem, size = 0x2000, scoped, tag = 'input window, operand 0, single buffered']
    #allocation3 [shape = 's32[1]{0}', space=sflag, size = 0x4, scoped, tag = 'scoped memory for tpu_custom_call.1']
    #allocation4 [shape = 's32[1]{0}', space=sflag, size = 0x4, scoped, tag = 'scoped memory for tpu_custom_call.1']
    #allocation5 [shape = 'u8[4096]{0}', space=vmem, size = 0x1000, scoped, tag = 'output window, operand 0, single buffered']
    %6 = vsyncpa [#allocation3], 0
    %7 = vsyncpa [#allocation4], 0
    // Predicated region
    $region2: #{tpu_custom_call.1} parent=1 // pred_check
      _
    $region3: #{tpu_custom_call.1} parent=1 // pred_check_branch
      %9 = sbr.rel (0) target = $region5
    $region4: #{tpu_custom_call.1} parent=1 // pred_region
      %s10 = sadd.s32 0, 0
      %s11 = smul.u32 2, %s10
      %s13 = ssub.s32 256, 256
      %14 = vsyncadd [#allocation3], %s13
      %s15 = smul.addr %s11, 128
      %s16 = scalar_lea.hbm %s0, %s15
      %s17 = sshll.u32 [#allocation2], 4
      %s18 = int_to_ptr.vmem [resolvable:$true] %s17
      %23 = dma.hbm_to_vmem [thread:$0]  %s16, 256, %s18, [#allocation3], 128, 128, 8
    $region5: #{tpu_custom_call.1} parent=1 // pred_fallthru
      _
    // Predicated region
    $region6: #{tpu_custom_call.1} parent=1 // pred_check
      _
    $region7: #{tpu_custom_call.1} parent=1 // pred_check_branch
      %25 = sbr.rel (0) target = $region9
    $region8: #{tpu_custom_call.1} parent=1 // pred_region
      %26 = dma.done [#allocation3], 256
    $region9: #{tpu_custom_call.1} parent=1 // pred_fallthru
      _
    %s27 = sadd.s32 0, 0
    %s28 = smul.u32 2, %s27
    %p29 = scmp.eq.s32.totalorder 0, 0
    // Predicated region
    $region10: #{tpu_custom_call.1} parent=1 // pred_check
      %p30 = pneg %p29
    $region11: #{tpu_custom_call.1} parent=1 // pred_check_branch
      %32 = sbr.rel (%p30) target = $region13
    $region12: #{tpu_custom_call.1} parent=1 // pred_region
      %33 = vst [vmem:[#allocation5] sm:$0xff] 0.0
    $region13: #{tpu_custom_call.1} parent=1 // pred_fallthru
      _
    %v34 = vld [vmem:[#allocation2] sm:$0xff]
    %v35 = vld [vmem:[#allocation2 + $0x8] sm:$0xff]
    %v36 = vlog2.pop %v34
    %v37 = vmul.f32 %v36, 0.6931472
    %v38 = vlog2.pop %v35
    %v39 = vmul.f32 %v38, 0.6931472
    %v40 = vld [vmem:[#allocation5] sm:$0xff]
    %v41 = vadd.f32 %v37, %v39
    %v42 = vadd.f32 %v40, %v41
    %43 = vst [vmem:[#allocation5] sm:$0xff] %v42
    // Predicated region
    $region14: #{tpu_custom_call.1} parent=1 // pred_check
      _
    $region15: #{tpu_custom_call.1} parent=1 // pred_check_branch
      %45 = sbr.rel (0) target = $region17
    $region16: #{tpu_custom_call.1} parent=1 // pred_region
      %s47 = ssub.s32 128, 128
      %48 = vsyncadd [#allocation4], %s47
      %s50 = sshll.u32 [#allocation5], 4
      %s51 = int_to_ptr.vmem [resolvable:$true] %s50
      %53 = dma.vmem_to_hbm [thread:$0]  %s51, 128, %s1, [#allocation4]
    $region17: #{tpu_custom_call.1} parent=1 // pred_fallthru
      _
    // Predicated region
    $region18: #{tpu_custom_call.1} parent=1 // pred_check
      _
    $region19: #{tpu_custom_call.1} parent=1 // pred_check_branch
      %55 = sbr.rel (0) target = $region21
    $region20: #{tpu_custom_call.1} parent=1 // pred_region
      %56 = dma.done [#allocation4], 128
    $region21: #{tpu_custom_call.1} parent=1 // pred_fallthru
      _
    %57 = vsyncpa [#allocation3], 1
    %58 = vsyncpa [#allocation4], 1

</llo_original>
